<compile_context>
chip_gen: v5e
topology: v5e:2x2
jax: 0.10.0
libtpu: 0.0.40
codegen_flags: <defaults>
</compile_context>

<pallas_src>
import numpy as np
import jax
import jax.numpy as jnp
from jax.experimental import pallas as pl
from jax.experimental.pallas import tpu as pltpu


def _pool_axis(v, axis):
    """3-tap, stride-2, pad-1 *sum* pooling along `axis` (the /27 is applied later).

    out[..., o, ...] = v[2o-1] + v[2o] + v[2o+1], with out-of-range taps contributing 0
    (count_include_pad=True semantics). Implemented with contiguous slices, small
    keepdims reductions and a concatenate — all of which lower cleanly in Mosaic.
    The window loop is unrolled at trace time (Lo is a compile-time constant).
    """
    L = v.shape[axis]
    Lo = (L - 1) // 2 + 1
    pieces = []
    for o in range(Lo):
        lo = max(2 * o - 1, 0)
        hi = min(2 * o + 2, L)
        window = jax.lax.slice_in_dim(v, lo, hi, axis=axis)
        pieces.append(jnp.sum(window, axis=axis, keepdims=True))
    if Lo == 1:
        return pieces[0]
    return jnp.concatenate(pieces, axis=axis)


def _avg_pool3d_kernel(x_ref, o_ref):
    # x_ref: (tile_rows, D, H, W) VMEM block; o_ref: (tile_rows, Do, Ho, Wo)
    x = x_ref[...].astype(jnp.float32)
    y = _pool_axis(x, axis=1)   # pool D -> (t, Do, H,  W)
    y = _pool_axis(y, axis=2)   # pool H -> (t, Do, Ho, W)
    y = _pool_axis(y, axis=3)   # pool W -> (t, Do, Ho, Wo)
    # Single fused scale + cast epilogue (divisor is always 27 with count_include_pad).
    o_ref[...] = (y * (1.0 / 27.0)).astype(o_ref.dtype)


def avg_pool3d_3x3x3_s2_p1(x, *, tile_rows=None):
    """avg_pool3d(kernel=3, stride=2, padding=1, count_include_pad=True) on NCDHW."""
    N, C, D, H, W = x.shape
    out_dim = lambda s: (s - 1) // 2 + 1        # == (s + 2*1 - 3)//2 + 1
    Do, Ho, Wo = out_dim(D), out_dim(H), out_dim(W)
    NC = N * C

    # Free reshape (merges leading dims only) — pooling is independent per (n, c) row.
    x4 = x.reshape(NC, D, H, W)

    itemsize = jnp.dtype(x.dtype).itemsize
    if tile_rows is None:
        # Keep the double-buffered input tile a few MiB so it comfortably fits the
        # scoped VMEM budget on every generation (incl. v7x's smaller VMEM), while
        # still giving >= 2 grid steps for pipelining / megacore when NC >= 2.
        budget = max(1, (4 * 1024 * 1024) // max(1, D * H * W * itemsize))
        tile_rows = max(1, min(NC, budget, (NC + 1) // 2))
    grid = (pl.cdiv(NC, tile_rows),)

    out4 = pl.pallas_call(
        _avg_pool3d_kernel,
        out_shape=jax.ShapeDtypeStruct((NC, Do, Ho, Wo), x.dtype),
        grid=grid,
        in_specs=[pl.BlockSpec((tile_rows, D, H, W), lambda i: (i, 0, 0, 0))],
        out_specs=pl.BlockSpec((tile_rows, Do, Ho, Wo), lambda i: (i, 0, 0, 0)),
        compiler_params=pltpu.CompilerParams(
            dimension_semantics=("parallel",),
        ),
        cost_estimate=pl.CostEstimate(
            flops=27 * NC * Do * Ho * Wo,
            transcendentals=0,
            bytes_accessed=itemsize * (NC * D * H * W + NC * Do * Ho * Wo),
        ),
    )(x4)

    return out4.reshape(N, C, Do, Ho, Wo)


def _ref_avg_pool3d(x):
    """Pure-JAX reference matching torch avg_pool3d(k=3, s=2, p=1, count_include_pad=True)."""
    xf = x.astype(jnp.float32)
    summed = jax.lax.reduce_window(
        xf,
        0.0,
        jax.lax.add,
        window_dimensions=(1, 1, 3, 3, 3),
        window_strides=(1, 1, 2, 2, 2),
        padding=((0, 0), (0, 0), (1, 1), (1, 1), (1, 1)),
    )
    return (summed / 27.0).astype(x.dtype)


if __name__ == "__main__":
    key = jax.random.PRNGKey(0)
    # Small 5-D input consistent with avg_pool3d: (N, C, D, H, W)
    x = jax.random.normal(key, (2, 4, 8, 8, 8), dtype=jnp.float32)

    out = jax.block_until_ready(avg_pool3d_3x3x3_s2_p1(x))

    assert out.shape == (2, 4, 4, 4, 4), out.shape
    ref = _ref_avg_pool3d(x)
    np.testing.assert_allclose(np.asarray(out), np.asarray(ref), atol=1e-4, rtol=1e-4)

    print("KERNEL_OK")
</pallas_src>

<mosaic_0001>
module attributes {stable_mosaic.version = 11 : i64} {
  func.func @_avg_pool3d_kernel(%arg0: i32, %arg1: memref<4x8x8x8xf32, #tpu.memory_space<vmem>>, %arg2: memref<4x4x4x4xf32, #tpu.memory_space<vmem>>) attributes {dimension_semantics = [#tpu.dimension_semantics<parallel>], iteration_bounds = array<i64: 2>, scalar_prefetch = 0 : i64, scratch_operands = 0 : i64, tpu.core_type = #tpu.core_type<tc>, window_params = [{transform_indices = @transform_0, window_bounds = array<i64: 4, 8, 8, 8>}, {transform_indices = @transform_1, window_bounds = array<i64: 4, 4, 4, 4>}]} {
    %c0 = arith.constant 0 : index
    %c0_0 = arith.constant 0 : index
    %c0_1 = arith.constant 0 : index
    %c0_2 = arith.constant 0 : index
    %0 = vector.load %arg1[%c0, %c0_0, %c0_1, %c0_2] : memref<4x8x8x8xf32, #tpu.memory_space<vmem>>, vector<4x8x8x8xf32>
    %1 = vector.extract_strided_slice %0 {offsets = [0, 0, 0, 0], sizes = [4, 2, 8, 8], strides = [1, 1, 1, 1]} : vector<4x8x8x8xf32> to vector<4x2x8x8xf32>
    %cst = arith.constant dense<0.000000e+00> : vector<4x8x8xf32>
    %2 = vector.multi_reduction <add>, %1, %cst [1] : vector<4x2x8x8xf32> to vector<4x8x8xf32>
    %3 = vector.shape_cast %2 : vector<4x8x8xf32> to vector<4x1x8x8xf32>
    %4 = vector.extract_strided_slice %0 {offsets = [0, 1, 0, 0], sizes = [4, 3, 8, 8], strides = [1, 1, 1, 1]} : vector<4x8x8x8xf32> to vector<4x3x8x8xf32>
    %cst_3 = arith.constant dense<0.000000e+00> : vector<4x8x8xf32>
    %5 = vector.multi_reduction <add>, %4, %cst_3 [1] : vector<4x3x8x8xf32> to vector<4x8x8xf32>
    %6 = vector.shape_cast %5 : vector<4x8x8xf32> to vector<4x1x8x8xf32>
    %7 = vector.extract_strided_slice %0 {offsets = [0, 3, 0, 0], sizes = [4, 3, 8, 8], strides = [1, 1, 1, 1]} : vector<4x8x8x8xf32> to vector<4x3x8x8xf32>
    %cst_4 = arith.constant dense<0.000000e+00> : vector<4x8x8xf32>
    %8 = vector.multi_reduction <add>, %7, %cst_4 [1] : vector<4x3x8x8xf32> to vector<4x8x8xf32>
    %9 = vector.shape_cast %8 : vector<4x8x8xf32> to vector<4x1x8x8xf32>
    %10 = vector.extract_strided_slice %0 {offsets = [0, 5, 0, 0], sizes = [4, 3, 8, 8], strides = [1, 1, 1, 1]} : vector<4x8x8x8xf32> to vector<4x3x8x8xf32>
    %cst_5 = arith.constant dense<0.000000e+00> : vector<4x8x8xf32>
    %11 = vector.multi_reduction <add>, %10, %cst_5 [1] : vector<4x3x8x8xf32> to vector<4x8x8xf32>
    %12 = vector.shape_cast %11 : vector<4x8x8xf32> to vector<4x1x8x8xf32>
    %13 = tpu.concatenate %3, %6, %9, %12 in 1 : vector<4x1x8x8xf32>, vector<4x1x8x8xf32>, vector<4x1x8x8xf32>, vector<4x1x8x8xf32> -> vector<4x4x8x8xf32>
    %14 = vector.extract_strided_slice %13 {offsets = [0, 0, 0, 0], sizes = [4, 4, 2, 8], strides = [1, 1, 1, 1]} : vector<4x4x8x8xf32> to vector<4x4x2x8xf32>
    %cst_6 = arith.constant dense<0.000000e+00> : vector<4x4x8xf32>
    %15 = vector.multi_reduction <add>, %14, %cst_6 [2] : vector<4x4x2x8xf32> to vector<4x4x8xf32>
    %16 = vector.shape_cast %15 : vector<4x4x8xf32> to vector<4x4x1x8xf32>
    %17 = vector.extract_strided_slice %13 {offsets = [0, 0, 1, 0], sizes = [4, 4, 3, 8], strides = [1, 1, 1, 1]} : vector<4x4x8x8xf32> to vector<4x4x3x8xf32>
    %cst_7 = arith.constant dense<0.000000e+00> : vector<4x4x8xf32>
    %18 = vector.multi_reduction <add>, %17, %cst_7 [2] : vector<4x4x3x8xf32> to vector<4x4x8xf32>
    %19 = vector.shape_cast %18 : vector<4x4x8xf32> to vector<4x4x1x8xf32>
    %20 = vector.extract_strided_slice %13 {offsets = [0, 0, 3, 0], sizes = [4, 4, 3, 8], strides = [1, 1, 1, 1]} : vector<4x4x8x8xf32> to vector<4x4x3x8xf32>
    %cst_8 = arith.constant dense<0.000000e+00> : vector<4x4x8xf32>
    %21 = vector.multi_reduction <add>, %20, %cst_8 [2] : vector<4x4x3x8xf32> to vector<4x4x8xf32>
    %22 = vector.shape_cast %21 : vector<4x4x8xf32> to vector<4x4x1x8xf32>
    %23 = vector.extract_strided_slice %13 {offsets = [0, 0, 5, 0], sizes = [4, 4, 3, 8], strides = [1, 1, 1, 1]} : vector<4x4x8x8xf32> to vector<4x4x3x8xf32>
    %cst_9 = arith.constant dense<0.000000e+00> : vector<4x4x8xf32>
    %24 = vector.multi_reduction <add>, %23, %cst_9 [2] : vector<4x4x3x8xf32> to vector<4x4x8xf32>
    %25 = vector.shape_cast %24 : vector<4x4x8xf32> to vector<4x4x1x8xf32>
    %26 = tpu.concatenate %16, %19, %22, %25 in 2 : vector<4x4x1x8xf32>, vector<4x4x1x8xf32>, vector<4x4x1x8xf32>, vector<4x4x1x8xf32> -> vector<4x4x4x8xf32>
    %27 = vector.extract_strided_slice %26 {offsets = [0, 0, 0, 0], sizes = [4, 4, 4, 2], strides = [1, 1, 1, 1]} : vector<4x4x4x8xf32> to vector<4x4x4x2xf32>
    %cst_10 = arith.constant dense<0.000000e+00> : vector<4x4x4xf32>
    %28 = vector.multi_reduction <add>, %27, %cst_10 [3] : vector<4x4x4x2xf32> to vector<4x4x4xf32>
    %29 = vector.shape_cast %28 : vector<4x4x4xf32> to vector<4x4x4x1xf32>
    %30 = vector.extract_strided_slice %26 {offsets = [0, 0, 0, 1], sizes = [4, 4, 4, 3], strides = [1, 1, 1, 1]} : vector<4x4x4x8xf32> to vector<4x4x4x3xf32>
    %cst_11 = arith.constant dense<0.000000e+00> : vector<4x4x4xf32>
    %31 = vector.multi_reduction <add>, %30, %cst_11 [3] : vector<4x4x4x3xf32> to vector<4x4x4xf32>
    %32 = vector.shape_cast %31 : vector<4x4x4xf32> to vector<4x4x4x1xf32>
    %33 = vector.extract_strided_slice %26 {offsets = [0, 0, 0, 3], sizes = [4, 4, 4, 3], strides = [1, 1, 1, 1]} : vector<4x4x4x8xf32> to vector<4x4x4x3xf32>
    %cst_12 = arith.constant dense<0.000000e+00> : vector<4x4x4xf32>
    %34 = vector.multi_reduction <add>, %33, %cst_12 [3] : vector<4x4x4x3xf32> to vector<4x4x4xf32>
    %35 = vector.shape_cast %34 : vector<4x4x4xf32> to vector<4x4x4x1xf32>
    %36 = vector.extract_strided_slice %26 {offsets = [0, 0, 0, 5], sizes = [4, 4, 4, 3], strides = [1, 1, 1, 1]} : vector<4x4x4x8xf32> to vector<4x4x4x3xf32>
    %cst_13 = arith.constant dense<0.000000e+00> : vector<4x4x4xf32>
    %37 = vector.multi_reduction <add>, %36, %cst_13 [3] : vector<4x4x4x3xf32> to vector<4x4x4xf32>
    %38 = vector.shape_cast %37 : vector<4x4x4xf32> to vector<4x4x4x1xf32>
    %39 = tpu.concatenate %29, %32, %35, %38 in 3 : vector<4x4x4x1xf32>, vector<4x4x4x1xf32>, vector<4x4x4x1xf32>, vector<4x4x4x1xf32> -> vector<4x4x4x4xf32>
    %cst_14 = arith.constant 0.0370370373 : f32
    %40 = vector.broadcast %cst_14 : f32 to vector<4x4x4x4xf32>
    %41 = arith.mulf %39, %40 : vector<4x4x4x4xf32>
    %c0_15 = arith.constant 0 : index
    %c0_16 = arith.constant 0 : index
    %c0_17 = arith.constant 0 : index
    %c0_18 = arith.constant 0 : index
    %42 = vector.load %arg2[%c0_15, %c0_16, %c0_17, %c0_18] : memref<4x4x4x4xf32, #tpu.memory_space<vmem>>, vector<4x4x4x4xf32>
    tpu.vector_store %arg2[%c0_15, %c0_16, %c0_17, %c0_18], %41 {strides = array<i32>} : memref<4x4x4x4xf32, #tpu.memory_space<vmem>>, vector<4x4x4x4xf32>,
    return
  }
  func.func @transform_0(%arg0: i32) -> (i32, i32, i32, i32) {
    %c0_i32 = arith.constant 0 : i32
    %c0_i32_0 = arith.constant 0 : i32
    %c0_i32_1 = arith.constant 0 : i32
    %c0_i32_2 = arith.constant 0 : i32
    return %arg0, %c0_i32, %c0_i32_0, %c0_i32_1 : i32, i32, i32, i32
  }
  func.func @transform_1(%arg0: i32) -> (i32, i32, i32, i32) {
    %c0_i32 = arith.constant 0 : i32
    %c0_i32_0 = arith.constant 0 : i32
    %c0_i32_1 = arith.constant 0 : i32
    %c0_i32_2 = arith.constant 0 : i32
    return %arg0, %c0_i32, %c0_i32_0, %c0_i32_1 : i32, i32, i32, i32
  }
}

</mosaic_0001>

<llo_original>
// kernel: tpu_custom_call.1
$region0: #{tpu_custom_call.1}
  #allocation0 [shape = 'u32[]', space=smem, size = 0x4, offset = 0x4, fixed_abs, tag = 'smem constant byte address 0x4 - core index']
  #allocation1 [shape = 'u32[72,128]{1,0:T(1,128)}', space=vmem, size = 0x9000, scoped, tag = 'internal scratch']
  %s0 = inlined_call_operand.hbm [shape: f32[8,8,8,8], index: 0, kind: input, shape index: {}]
  %s1 = inlined_call_operand.vmem [shape: f32[8,4,4,4], index: 1, kind: output, shape index: {}]
  %s2 = sld [smem:[#allocation0]]
  $region41: #{tpu_custom_call.1} parent=0
    _
  %s4 = ssub.s32 1, %s2
  %s5 = scalar_select 0, %s4, %s2
  $region1: #{tpu_custom_call.1} parent=0
    #allocation2 [shape = 'u8[262144]{0}', space=vmem, size = 0x40000, scoped, tag = 'input window, operand 0']
    #allocation3 [shape = 's32[2]{0}', space=sflag, size = 0x8, scoped, tag = 'scoped memory for tpu_custom_call.1']
    %6 = vsyncpa [#allocation3], 0
    %s7 = scalar_lea.sflag [#allocation3], 1
    %8 = vsyncpa %s7, 0
    loop: start=0, step=1, limit=4
    $region2: #{tpu_custom_call.1} parent=1 // loop_pre_header
      _
    $region3: #{tpu_custom_call.1} parent=1 // loop_header
      %s10 = sphi 0, %s14
      %p11 = scmp.ge.s32.totalorder %s10, 4
      %s20 = sphi 0, %s22
      %s23 = sphi 0, %s20
      %s24 = sphi 0, %s23
      %s40 = sphi 0, %s24
      %s46 = sphi 0, %s48
      %s49 = sphi 0, %s46
      %s50 = sphi 0, %s49
      %s66 = sphi 0, %s50
    $region4: #{tpu_custom_call.1} parent=1 // loop_header_branch
      %13 = sbr.rel (%p11) target = $region8
    $region5: #{tpu_custom_call.1} parent=1 // loop_body
      %s15 = ssub.s32 %s10, 1
      %s16 = ssub.s32 %s10, 2
      %s17 = sadd.s32 %s10, 1
      %s18 = ssub.s32 %s10, %s17
      %p19 = scmp.eq.s32.totalorder %s18, 0
      %s21 = sadd.s32 %s20, 1
      %s22 = scalar_select %p19, %s20, %s21
      %p25 = pneg %p19
      %p26 = scmp.eq.s32.totalorder %s10, 1
      %p27 = por %p25, %p26
      %p28 = scmp.ne.s32.totalorder %s20, %s23
      %p29 = scmp.eq.s32.totalorder %s10, 0
      %p30 = por %p28, %p29
      %p31 = scmp.ne.s32.totalorder %s20, %s23
      %p32 = scmp.eq.s32.totalorder %s15, 1
      %p33 = por %p31, %p32
      %p34 = scmp.ne.s32.totalorder %s23, %s24
      %p35 = scmp.eq.s32.totalorder %s15, 0
      %p36 = por %p34, %p35
      %p37 = scmp.ne.s32.totalorder %s23, %s24
      %p38 = scmp.eq.s32.totalorder %s16, 1
      %p39 = por %p37, %p38
      %p41 = scmp.ne.s32.totalorder %s24, %s40
      %p42 = scmp.eq.s32.totalorder %s16, 0
      %p43 = por %p41, %p42
      %s44 = ssub.s32 %s10, %s17
      %p45 = scmp.eq.s32.totalorder %s44, 0
      %s47 = sadd.s32 %s46, 1
      %s48 = scalar_select %p45, %s46, %s47
      %p51 = pneg %p45
      %p52 = scmp.eq.s32.totalorder %s10, 1
      %p53 = por %p51, %p52
      %p54 = scmp.ne.s32.totalorder %s46, %s49
      %p55 = scmp.eq.s32.totalorder %s10, 0
      %p56 = por %p54, %p55
      %p57 = scmp.ne.s32.totalorder %s46, %s49
      %p58 = scmp.eq.s32.totalorder %s15, 1
      %p59 = por %p57, %p58
      %p60 = scmp.ne.s32.totalorder %s49, %s50
      %p61 = scmp.eq.s32.totalorder %s15, 0
      %p62 = por %p60, %p61
      %p63 = scmp.ne.s32.totalorder %s49, %s50
      %p64 = scmp.eq.s32.totalorder %s16, 1
      %p65 = por %p63, %p64
      %p67 = scmp.ne.s32.totalorder %s50, %s66
      %p68 = scmp.eq.s32.totalorder %s16, 0
      %p69 = por %p67, %p68
      %p70 = scmp.le.s32.totalorder 1, %s10
      %p71 = scmp.lt.s32.totalorder %s10, 3
      %p72 = pnand %p70, %p71
      %p73 = pneg %p72
      // Predicated region
      $region9: #{tpu_custom_call.1} parent=5 // pred_check
        _
      $region10: #{tpu_custom_call.1} parent=5 // pred_check_branch
        %75 = sbr.rel (%p72) target = $region12
      $region11: #{tpu_custom_call.1} parent=5 // pred_region
        %s76 = ssub.s32 %s10, 1
      $region12: #{tpu_custom_call.1} parent=5 // pred_fallthru
        _
      %p77 = scmp.lt.s32.totalorder %s10, 2
      // Predicated region
      $region13: #{tpu_custom_call.1} parent=5 // pred_check
        %p78 = pneg %p77
      $region14: #{tpu_custom_call.1} parent=5 // pred_check_branch
        %80 = sbr.rel (%p78) target = $region16
      $region15: #{tpu_custom_call.1} parent=5 // pred_region
        // Predicated region
        $region17: #{tpu_custom_call.1} parent=15 // pred_check
          %p81 = pneg %p30
        $region18: #{tpu_custom_call.1} parent=15 // pred_check_branch
          %83 = sbr.rel (%p81) target = $region20
        $region19: #{tpu_custom_call.1} parent=15 // pred_region
          %s84 = sand.u32 %s20, 1
          %s85 = scalar_lea.sflag [#allocation3], %s84
          %s86 = sand.u32 %s20, 1
          %s87 = smul.addr %s86, 256
          %s88 = scalar_lea.vmem [#allocation2], %s87
          %s89 = smul.u32 4, %s10
          %91 = vsyncadd %s85, 0
          %s92 = smul.addr %s89, 8
          %s93 = smul.addr %s92, 8
          %s94 = scalar_lea.hbm %s0, %s93
          %s95 = sshll.u32 %s94, 4
          %s96 = int_to_ptr.hbm [resolvable:$true] %s95
          %s97 = sshll.u32 %s88, 4
          %s98 = int_to_ptr.vmem [resolvable:$true] %s97
          %103 = dma.hbm_to_vmem [thread:$0]  %s96, 4096, %s98, %s85, 128, 128, 8
        $region20: #{tpu_custom_call.1} parent=15 // pred_fallthru
          _
      $region16: #{tpu_custom_call.1} parent=5 // pred_fallthru
        _
      %p104 = scmp.le.s32.totalorder 1, %s10
      %p105 = scmp.lt.s32.totalorder %s10, 3
      %p106 = pnand %p104, %p105
      %p107 = pneg %p106
      // Predicated region
      $region21: #{tpu_custom_call.1} parent=5 // pred_check
        _
      $region22: #{tpu_custom_call.1} parent=5 // pred_check_branch
        %109 = sbr.rel (%p106) target = $region24
      $region23: #{tpu_custom_call.1} parent=5 // pred_region
        %s110 = ssub.s32 %s10, 1
        %s111 = sand.u32 %s23, 1
        %s112 = scalar_lea.sflag [#allocation3], %s111
        %s113 = sand.u32 %s23, 1
        %s114 = smul.addr %s113, 256
        %s115 = scalar_lea.vmem [#allocation2], %s114
        // Predicated region
        $region25: #{tpu_custom_call.1} parent=23 // pred_check
          %p116 = pneg %p36
        $region26: #{tpu_custom_call.1} parent=23 // pred_check_branch
          %118 = sbr.rel (%p116) target = $region28
        $region27: #{tpu_custom_call.1} parent=23 // pred_region
          %120 = dma.done %s112, 4096
        $region28: #{tpu_custom_call.1} parent=23 // pred_fallthru
          _
        %s121 = sand.u32 %s23, 1
        %s122 = scalar_lea.sflag [#allocation3], %s121
        %s123 = sand.u32 %s23, 1
        %s124 = smul.addr %s123, 256
        %s125 = scalar_lea.vmem [#allocation2], %s124
        %p126 = pneg %p36
        %p127 = pneg %p33
        %p128 = pneg %p62
        %p129 = pneg %p59
        %s130 = smul.u32 4, %s15
        %p131 = scmp.lt.s32.totalorder %s130, 7
        %s132 = scalar_select %p131, %s130, 7
        %s133 = smul.addr %s132, 4
        %s134 = smul.addr %s133, 4
        %s135 = scalar_lea.vmem %s1, %s134
        %s136 = smul.u32 4, %s15
        %s137 = smul.u32 4, %s15
        %p138 = scmp.lt.s32.totalorder %s137, 7
        %s139 = scalar_select %p138, %s137, 7
        %s140 = smul.addr %s139, 4
        %s141 = smul.addr %s140, 4
        %s142 = scalar_lea.vmem %s1, %s141
        %s143 = smul.u32 4, %s15
        %v144 = vld [vmem:[%s115] sm:$0xff]
        %v145 = vld [vmem:[%s115 + $0x8] sm:$0xff]
        %v146 = vld [vmem:[%s115 + $0x10] sm:$0xff]
        %v147 = vld [vmem:[%s115 + $0x18] sm:$0xff]
        %v148 = vld [vmem:[%s115 + $0x20] sm:$0xff]
        %v149 = vld [vmem:[%s115 + $0x28] sm:$0xff]
        %v150 = vld [vmem:[%s115 + $0x30] sm:$0xff]
        %v151 = vld [vmem:[%s115 + $0x38] sm:$0xff]
        %v152 = vld [vmem:[%s115 + $0x40] sm:$0xff]
        %v153 = vld [vmem:[%s115 + $0x48] sm:$0xff]
        %v154 = vld [vmem:[%s115 + $0x50] sm:$0xff]
        %v155 = vld [vmem:[%s115 + $0x58] sm:$0xff]
        %v156 = vld [vmem:[%s115 + $0x60] sm:$0xff]
        %v157 = vld [vmem:[%s115 + $0x68] sm:$0xff]
        %v158 = vld [vmem:[%s115 + $0x70] sm:$0xff]
        %v159 = vld [vmem:[%s115 + $0x78] sm:$0xff]
        %v160 = vld [vmem:[%s115 + $0x80] sm:$0xff]
        %v161 = vld [vmem:[%s115 + $0x88] sm:$0xff]
        %v162 = vld [vmem:[%s115 + $0x90] sm:$0xff]
        %v163 = vld [vmem:[%s115 + $0x98] sm:$0xff]
        %v164 = vld [vmem:[%s115 + $0xa0] sm:$0xff]
        %v165 = vld [vmem:[%s115 + $0xa8] sm:$0xff]
        %v166 = vld [vmem:[%s115 + $0xb0] sm:$0xff]
        %v167 = vld [vmem:[%s115 + $0xb8] sm:$0xff]
        %v168 = vld [vmem:[%s115 + $0xc0] sm:$0xff]
        %v169 = vld [vmem:[%s115 + $0xc8] sm:$0xff]
        %v170 = vld [vmem:[%s115 + $0xd0] sm:$0xff]
        %v171 = vld [vmem:[%s115 + $0xd8] sm:$0xff]
        %v172 = vld [vmem:[%s115 + $0xe0] sm:$0xff]
        %v173 = vld [vmem:[%s115 + $0xe8] sm:$0xff]
        %v174 = vld [vmem:[%s115 + $0xf0] sm:$0xff]
        %v175 = vld [vmem:[%s115 + $0xf8] sm:$0xff]
        %vm176 = vcmask 64512
        %v177 = vsel %vm176, %v144, 0.0
        %v178 = vsel %vm176, %v145, 0.0
        %v179 = vadd.f32 %v177, %v178
        %v180 = vsel %vm176, %v152, 0.0
        %v181 = vsel %vm176, %v153, 0.0
        %v182 = vadd.f32 %v180, %v181
        %v183 = vsel %vm176, %v160, 0.0
        %v184 = vsel %vm176, %v161, 0.0
        %v185 = vadd.f32 %v183, %v184
        %v186 = vsel %vm176, %v168, 0.0
        %v187 = vsel %vm176, %v169, 0.0
        %v188 = vadd.f32 %v186, %v187
        %v189 = vsel %vm176, %v146, 0.0
        %v190 = vadd.f32 %v178, %v189
        %v191 = vsel %vm176, %v147, 0.0
        %v192 = vadd.f32 %v190, %v191
        %v193 = vsel %vm176, %v154, 0.0
        %v194 = vadd.f32 %v181, %v193
        %v195 = vsel %vm176, %v155, 0.0
        %v196 = vadd.f32 %v194, %v195
        %v197 = vsel %vm176, %v162, 0.0
        %v198 = vadd.f32 %v184, %v197
        %v199 = vsel %vm176, %v163, 0.0
        %v200 = vadd.f32 %v198, %v199
        %v201 = vsel %vm176, %v170, 0.0
        %v202 = vadd.f32 %v187, %v201
        %v203 = vsel %vm176, %v171, 0.0
        %v204 = vadd.f32 %v202, %v203
        %v205 = vsel %vm176, %v148, 0.0
        %v206 = vadd.f32 %v191, %v205
        %v207 = vsel %vm176, %v149, 0.0
        %v208 = vadd.f32 %v206, %v207
        %v209 = vsel %vm176, %v156, 0.0
        %v210 = vadd.f32 %v195, %v209
        %v211 = vsel %vm176, %v157, 0.0
        %v212 = vadd.f32 %v210, %v211
        %v213 = vsel %vm176, %v164, 0.0
        %v214 = vadd.f32 %v199, %v213
        %v215 = vsel %vm176, %v165, 0.0
        %v216 = vadd.f32 %v214, %v215
        %v217 = vsel %vm176, %v172, 0.0
        %v218 = vadd.f32 %v203, %v217
        %v219 = vsel %vm176, %v173, 0.0
        %v220 = vadd.f32 %v218, %v219
        %v221 = vsel %vm176, %v150, 0.0
        %v222 = vadd.f32 %v207, %v221
        %v223 = vsel %vm176, %v151, 0.0
        %v224 = vadd.f32 %v222, %v223
        %v225 = vsel %vm176, %v158, 0.0
        %v226 = vadd.f32 %v211, %v225
        %v227 = vsel %vm176, %v159, 0.0
        %v228 = vadd.f32 %v226, %v227
        %v229 = vsel %vm176, %v166, 0.0
        %v230 = vadd.f32 %v215, %v229
        %v231 = vsel %vm176, %v167, 0.0
        %v232 = vadd.f32 %v230, %v231
        %v233 = vsel %vm176, %v174, 0.0
        %v234 = vadd.f32 %v219, %v233
        %v235 = vsel %vm176, %v175, 0.0
        %v236 = vadd.f32 %v234, %v235
        %vm237 = vcmask 58368
        %v238 = vsel %vm237, %v179, 0.0
        %v239 = vrot.slane %v238, 4
        %v240 = vadd.f32 %v238, %v239
        %v241 = vrot.slane %v240, 2
        %v242 = vadd.f32 %v240, %v241
        %v243 = vrot.slane %v242, 1
        %v244 = vadd.f32 %v242, %v243
        %v245 = vsel %vm237, %v192, 0.0
        %v246 = vrot.slane %v245, 4
        %v247 = vadd.f32 %v245, %v246
        %v248 = vrot.slane %v247, 2
        %v249 = vadd.f32 %v247, %v248
        %v250 = vrot.slane %v249, 1
        %v251 = vadd.f32 %v249, %v250
        %v252 = vsel %vm237, %v208, 0.0
        %v253 = vrot.slane %v252, 4
        %v254 = vadd.f32 %v252, %v253
        %v255 = vrot.slane %v254, 2
        %v256 = vadd.f32 %v254, %v255
        %v257 = vrot.slane %v256, 1
        %v258 = vadd.f32 %v256, %v257
        %v259 = vsel %vm237, %v224, 0.0
        %v260 = vrot.slane %v259, 4
        %v261 = vadd.f32 %v259, %v260
        %v262 = vrot.slane %v261, 2
        %v263 = vadd.f32 %v261, %v262
        %v264 = vrot.slane %v263, 1
        %v265 = vadd.f32 %v263, %v264
        %v266 = vsel %vm237, %v182, 0.0
        %v267 = vrot.slane %v266, 4
        %v268 = vadd.f32 %v266, %v267
        %v269 = vrot.slane %v268, 2
        %v270 = vadd.f32 %v268, %v269
        %v271 = vrot.slane %v270, 1
        %v272 = vadd.f32 %v270, %v271
        %v273 = vsel %vm237, %v196, 0.0
        %v274 = vrot.slane %v273, 4
        %v275 = vadd.f32 %v273, %v274
        %v276 = vrot.slane %v275, 2
        %v277 = vadd.f32 %v275, %v276
        %v278 = vrot.slane %v277, 1
        %v279 = vadd.f32 %v277, %v278
        %v280 = vsel %vm237, %v212, 0.0
        %v281 = vrot.slane %v280, 4
        %v282 = vadd.f32 %v280, %v281
        %v283 = vrot.slane %v282, 2
        %v284 = vadd.f32 %v282, %v283
        %v285 = vrot.slane %v284, 1
        %v286 = vadd.f32 %v284, %v285
        %v287 = vsel %vm237, %v228, 0.0
        %v288 = vrot.slane %v287, 4
        %v289 = vadd.f32 %v287, %v288
        %v290 = vrot.slane %v289, 2
        %v291 = vadd.f32 %v289, %v290
        %v292 = vrot.slane %v291, 1
        %v293 = vadd.f32 %v291, %v292
        %v294 = vsel %vm237, %v185, 0.0
        %v295 = vrot.slane %v294, 4
        %v296 = vadd.f32 %v294, %v295
        %v297 = vrot.slane %v296, 2
        %v298 = vadd.f32 %v296, %v297
        %v299 = vrot.slane %v298, 1
        %v300 = vadd.f32 %v298, %v299
        %v301 = vsel %vm237, %v200, 0.0
        %v302 = vrot.slane %v301, 4
        %v303 = vadd.f32 %v301, %v302
        %v304 = vrot.slane %v303, 2
        %v305 = vadd.f32 %v303, %v304
        %v306 = vrot.slane %v305, 1
        %v307 = vadd.f32 %v305, %v306
        %v308 = vsel %vm237, %v216, 0.0
        %v309 = vrot.slane %v308, 4
        %v310 = vadd.f32 %v308, %v309
        %v311 = vrot.slane %v310, 2
        %v312 = vadd.f32 %v310, %v311
        %v313 = vrot.slane %v312, 1
        %v314 = vadd.f32 %v312, %v313
        %v315 = vsel %vm237, %v232, 0.0
        %v316 = vrot.slane %v315, 4
        %v317 = vadd.f32 %v315, %v316
        %v318 = vrot.slane %v317, 2
        %v319 = vadd.f32 %v317, %v318
        %v320 = vrot.slane %v319, 1
        %v321 = vadd.f32 %v319, %v320
        %v322 = vsel %vm237, %v188, 0.0
        %v323 = vrot.slane %v322, 4
        %v324 = vadd.f32 %v322, %v323
        %v325 = vrot.slane %v324, 2
        %v326 = vadd.f32 %v324, %v325
        %v327 = vrot.slane %v326, 1
        %v328 = vadd.f32 %v326, %v327
        %v329 = vsel %vm237, %v204, 0.0
        %v330 = vrot.slane %v329, 4
        %v331 = vadd.f32 %v329, %v330
        %v332 = vrot.slane %v331, 2
        %v333 = vadd.f32 %v331, %v332
        %v334 = vrot.slane %v333, 1
        %v335 = vadd.f32 %v333, %v334
        %v336 = vsel %vm237, %v220, 0.0
        %v337 = vrot.slane %v336, 4
        %v338 = vadd.f32 %v336, %v337
        %v339 = vrot.slane %v338, 2
        %v340 = vadd.f32 %v338, %v339
        %v341 = vrot.slane %v340, 1
        %v342 = vadd.f32 %v340, %v341
        %v343 = vsel %vm237, %v236, 0.0
        %v344 = vrot.slane %v343, 4
        %v345 = vadd.f32 %v343, %v344
        %v346 = vrot.slane %v345, 2
        %v347 = vadd.f32 %v345, %v346
        %v348 = vrot.slane %v347, 1
        %v349 = vadd.f32 %v347, %v348
        %v366 = vrot.slane %v179, 1
        %v367 = vrot.slane %v192, 1
        %v368 = vrot.slane %v208, 1
        %v369 = vrot.slane %v224, 1
        %v370 = vrot.slane %v182, 1
        %v371 = vrot.slane %v196, 1
        %v372 = vrot.slane %v212, 1
        %v373 = vrot.slane %v228, 1
        %v374 = vrot.slane %v185, 1
        %v375 = vrot.slane %v200, 1
        %v376 = vrot.slane %v216, 1
        %v377 = vrot.slane %v232, 1
        %v378 = vrot.slane %v188, 1
        %v379 = vrot.slane %v204, 1
        %v380 = vrot.slane %v220, 1
        %v381 = vrot.slane %v236, 1
        %vm398 = vcmask 59392
        %v399 = vsel %vm398, %v366, 0.0
        %v400 = vrot.slane %v399, 4
        %v401 = vadd.f32 %v399, %v400
        %v402 = vrot.slane %v401, 2
        %v403 = vadd.f32 %v401, %v402
        %v404 = vrot.slane %v403, 1
        %v405 = vadd.f32 %v403, %v404
        %v406 = vsel %vm398, %v367, 0.0
        %v407 = vrot.slane %v406, 4
        %v408 = vadd.f32 %v406, %v407
        %v409 = vrot.slane %v408, 2
        %v410 = vadd.f32 %v408, %v409
        %v411 = vrot.slane %v410, 1
        %v412 = vadd.f32 %v410, %v411
        %v413 = vsel %vm398, %v368, 0.0
        %v414 = vrot.slane %v413, 4
        %v415 = vadd.f32 %v413, %v414
        %v416 = vrot.slane %v415, 2
        %v417 = vadd.f32 %v415, %v416
        %v418 = vrot.slane %v417, 1
        %v419 = vadd.f32 %v417, %v418
        %v420 = vsel %vm398, %v369, 0.0
        %v421 = vrot.slane %v420, 4
        %v422 = vadd.f32 %v420, %v421
        %v423 = vrot.slane %v422, 2
        %v424 = vadd.f32 %v422, %v423
        %v425 = vrot.slane %v424, 1
        %v426 = vadd.f32 %v424, %v425
        %v427 = vsel %vm398, %v370, 0.0
        %v428 = vrot.slane %v427, 4
        %v429 = vadd.f32 %v427, %v428
        %v430 = vrot.slane %v429, 2
        %v431 = vadd.f32 %v429, %v430
        %v432 = vrot.slane %v431, 1
        %v433 = vadd.f32 %v431, %v432
        %v434 = vsel %vm398, %v371, 0.0
        %v435 = vrot.slane %v434, 4
        %v436 = vadd.f32 %v434, %v435
        %v437 = vrot.slane %v436, 2
        %v438 = vadd.f32 %v436, %v437
        %v439 = vrot.slane %v438, 1
        %v440 = vadd.f32 %v438, %v439
        %v441 = vsel %vm398, %v372, 0.0
        %v442 = vrot.slane %v441, 4
        %v443 = vadd.f32 %v441, %v442
        %v444 = vrot.slane %v443, 2
        %v445 = vadd.f32 %v443, %v444
        %v446 = vrot.slane %v445, 1
        %v447 = vadd.f32 %v445, %v446
        %v448 = vsel %vm398, %v373, 0.0
        %v449 = vrot.slane %v448, 4
        %v450 = vadd.f32 %v448, %v449
        %v451 = vrot.slane %v450, 2
        %v452 = vadd.f32 %v450, %v451
        %v453 = vrot.slane %v452, 1
        %v454 = vadd.f32 %v452, %v453
        %v455 = vsel %vm398, %v374, 0.0
        %v456 = vrot.slane %v455, 4
        %v457 = vadd.f32 %v455, %v456
        %v458 = vrot.slane %v457, 2
        %v459 = vadd.f32 %v457, %v458
        %v460 = vrot.slane %v459, 1
        %v461 = vadd.f32 %v459, %v460
        %v462 = vsel %vm398, %v375, 0.0
        %v463 = vrot.slane %v462, 4
        %v464 = vadd.f32 %v462, %v463
        %v465 = vrot.slane %v464, 2
        %v466 = vadd.f32 %v464, %v465
        %v467 = vrot.slane %v466, 1
        %v468 = vadd.f32 %v466, %v467
        %v469 = vsel %vm398, %v376, 0.0
        %v470 = vrot.slane %v469, 4
        %v471 = vadd.f32 %v469, %v470
        %v472 = vrot.slane %v471, 2
        %v473 = vadd.f32 %v471, %v472
        %v474 = vrot.slane %v473, 1
        %v475 = vadd.f32 %v473, %v474
        %v476 = vsel %vm398, %v377, 0.0
        %v477 = vrot.slane %v476, 4
        %v478 = vadd.f32 %v476, %v477
        %v479 = vrot.slane %v478, 2
        %v480 = vadd.f32 %v478, %v479
        %v481 = vrot.slane %v480, 1
        %v482 = vadd.f32 %v480, %v481
        %v483 = vsel %vm398, %v378, 0.0
        %v484 = vrot.slane %v483, 4
        %v485 = vadd.f32 %v483, %v484
        %v486 = vrot.slane %v485, 2
        %v487 = vadd.f32 %v485, %v486
        %v488 = vrot.slane %v487, 1
        %v489 = vadd.f32 %v487, %v488
        %v490 = vsel %vm398, %v379, 0.0
        %v491 = vrot.slane %v490, 4
        %v492 = vadd.f32 %v490, %v491
        %v493 = vrot.slane %v492, 2
        %v494 = vadd.f32 %v492, %v493
        %v495 = vrot.slane %v494, 1
        %v496 = vadd.f32 %v494, %v495
        %v497 = vsel %vm398, %v380, 0.0
        %v498 = vrot.slane %v497, 4
        %v499 = vadd.f32 %v497, %v498
        %v500 = vrot.slane %v499, 2
        %v501 = vadd.f32 %v499, %v500
        %v502 = vrot.slane %v501, 1
        %v503 = vadd.f32 %v501, %v502
        %v504 = vsel %vm398, %v381, 0.0
        %v505 = vrot.slane %v504, 4
        %v506 = vadd.f32 %v504, %v505
        %v507 = vrot.slane %v506, 2
        %v508 = vadd.f32 %v506, %v507
        %v509 = vrot.slane %v508, 1
        %v510 = vadd.f32 %v508, %v509
        %v511 = vrot.slane %v179, 3
        %v512 = vrot.slane %v192, 3
        %v513 = vrot.slane %v208, 3
        %v514 = vrot.slane %v224, 3
        %v515 = vrot.slane %v182, 3
        %v516 = vrot.slane %v196, 3
        %v517 = vrot.slane %v212, 3
        %v518 = vrot.slane %v228, 3
        %v519 = vrot.slane %v185, 3
        %v520 = vrot.slane %v200, 3
        %v521 = vrot.slane %v216, 3
        %v522 = vrot.slane %v232, 3
        %v523 = vrot.slane %v188, 3
        %v524 = vrot.slane %v204, 3
        %v525 = vrot.slane %v220, 3
        %v526 = vrot.slane %v236, 3
        %v543 = vsel %vm398, %v511, 0.0
        %v544 = vrot.slane %v543, 4
        %v545 = vadd.f32 %v543, %v544
        %v546 = vrot.slane %v545, 2
        %v547 = vadd.f32 %v545, %v546
        %v548 = vrot.slane %v547, 1
        %v549 = vadd.f32 %v547, %v548
        %v550 = vsel %vm398, %v512, 0.0
        %v551 = vrot.slane %v550, 4
        %v552 = vadd.f32 %v550, %v551
        %v553 = vrot.slane %v552, 2
        %v554 = vadd.f32 %v552, %v553
        %v555 = vrot.slane %v554, 1
        %v556 = vadd.f32 %v554, %v555
        %v557 = vsel %vm398, %v513, 0.0
        %v558 = vrot.slane %v557, 4
        %v559 = vadd.f32 %v557, %v558
        %v560 = vrot.slane %v559, 2
        %v561 = vadd.f32 %v559, %v560
        %v562 = vrot.slane %v561, 1
        %v563 = vadd.f32 %v561, %v562
        %v564 = vsel %vm398, %v514, 0.0
        %v565 = vrot.slane %v564, 4
        %v566 = vadd.f32 %v564, %v565
        %v567 = vrot.slane %v566, 2
        %v568 = vadd.f32 %v566, %v567
        %v569 = vrot.slane %v568, 1
        %v570 = vadd.f32 %v568, %v569
        %v571 = vsel %vm398, %v515, 0.0
        %v572 = vrot.slane %v571, 4
        %v573 = vadd.f32 %v571, %v572
        %v574 = vrot.slane %v573, 2
        %v575 = vadd.f32 %v573, %v574
        %v576 = vrot.slane %v575, 1
        %v577 = vadd.f32 %v575, %v576
        %v578 = vsel %vm398, %v516, 0.0
        %v579 = vrot.slane %v578, 4
        %v580 = vadd.f32 %v578, %v579
        %v581 = vrot.slane %v580, 2
        %v582 = vadd.f32 %v580, %v581
        %v583 = vrot.slane %v582, 1
        %v584 = vadd.f32 %v582, %v583
        %v585 = vsel %vm398, %v517, 0.0
        %v586 = vrot.slane %v585, 4
        %v587 = vadd.f32 %v585, %v586
        %v588 = vrot.slane %v587, 2
        %v589 = vadd.f32 %v587, %v588
        %v590 = vrot.slane %v589, 1
        %v591 = vadd.f32 %v589, %v590
        %v592 = vsel %vm398, %v518, 0.0
        %v593 = vrot.slane %v592, 4
        %v594 = vadd.f32 %v592, %v593
        %v595 = vrot.slane %v594, 2
        %v596 = vadd.f32 %v594, %v595
        %v597 = vrot.slane %v596, 1
        %v598 = vadd.f32 %v596, %v597
        %v599 = vsel %vm398, %v519, 0.0
        %v600 = vrot.slane %v599, 4
        %v601 = vadd.f32 %v599, %v600
        %v602 = vrot.slane %v601, 2
        %v603 = vadd.f32 %v601, %v602
        %v604 = vrot.slane %v603, 1
        %v605 = vadd.f32 %v603, %v604
        %v606 = vsel %vm398, %v520, 0.0
        %v607 = vrot.slane %v606, 4
        %v608 = vadd.f32 %v606, %v607
        %v609 = vrot.slane %v608, 2
        %v610 = vadd.f32 %v608, %v609
        %v611 = vrot.slane %v610, 1
        %v612 = vadd.f32 %v610, %v611
        %v613 = vsel %vm398, %v521, 0.0
        %v614 = vrot.slane %v613, 4
        %v615 = vadd.f32 %v613, %v614
        %v616 = vrot.slane %v615, 2
        %v617 = vadd.f32 %v615, %v616
        %v618 = vrot.slane %v617, 1
        %v619 = vadd.f32 %v617, %v618
        %v620 = vsel %vm398, %v522, 0.0
        %v621 = vrot.slane %v620, 4
        %v622 = vadd.f32 %v620, %v621
        %v623 = vrot.slane %v622, 2
        %v624 = vadd.f32 %v622, %v623
        %v625 = vrot.slane %v624, 1
        %v626 = vadd.f32 %v624, %v625
        %v627 = vsel %vm398, %v523, 0.0
        %v628 = vrot.slane %v627, 4
        %v629 = vadd.f32 %v627, %v628
        %v630 = vrot.slane %v629, 2
        %v631 = vadd.f32 %v629, %v630
        %v632 = vrot.slane %v631, 1
        %v633 = vadd.f32 %v631, %v632
        %v634 = vsel %vm398, %v524, 0.0
        %v635 = vrot.slane %v634, 4
        %v636 = vadd.f32 %v634, %v635
        %v637 = vrot.slane %v636, 2
        %v638 = vadd.f32 %v636, %v637
        %v639 = vrot.slane %v638, 1
        %v640 = vadd.f32 %v638, %v639
        %v641 = vsel %vm398, %v525, 0.0
        %v642 = vrot.slane %v641, 4
        %v643 = vadd.f32 %v641, %v642
        %v644 = vrot.slane %v643, 2
        %v645 = vadd.f32 %v643, %v644
        %v646 = vrot.slane %v645, 1
        %v647 = vadd.f32 %v645, %v646
        %v648 = vsel %vm398, %v526, 0.0
        %v649 = vrot.slane %v648, 4
        %v650 = vadd.f32 %v648, %v649
        %v651 = vrot.slane %v650, 2
        %v652 = vadd.f32 %v650, %v651
        %v653 = vrot.slane %v652, 1
        %v654 = vadd.f32 %v652, %v653
        %v655 = vrot.slane %v179, 5
        %v656 = vrot.slane %v192, 5
        %v657 = vrot.slane %v208, 5
        %v658 = vrot.slane %v224, 5
        %v659 = vrot.slane %v182, 5
        %v660 = vrot.slane %v196, 5
        %v661 = vrot.slane %v212, 5
        %v662 = vrot.slane %v228, 5
        %v663 = vrot.slane %v185, 5
        %v664 = vrot.slane %v200, 5
        %v665 = vrot.slane %v216, 5
        %v666 = vrot.slane %v232, 5
        %v667 = vrot.slane %v188, 5
        %v668 = vrot.slane %v204, 5
        %v669 = vrot.slane %v220, 5
        %v670 = vrot.slane %v236, 5
        %v687 = vsel %vm398, %v655, 0.0
        %v688 = vrot.slane %v687, 4
        %v689 = vadd.f32 %v687, %v688
        %v690 = vrot.slane %v689, 2
        %v691 = vadd.f32 %v689, %v690
        %v692 = vrot.slane %v691, 1
        %v693 = vadd.f32 %v691, %v692
        %v694 = vsel %vm398, %v656, 0.0
        %v695 = vrot.slane %v694, 4
        %v696 = vadd.f32 %v694, %v695
        %v697 = vrot.slane %v696, 2
        %v698 = vadd.f32 %v696, %v697
        %v699 = vrot.slane %v698, 1
        %v700 = vadd.f32 %v698, %v699
        %v701 = vsel %vm398, %v657, 0.0
        %v702 = vrot.slane %v701, 4
        %v703 = vadd.f32 %v701, %v702
        %v704 = vrot.slane %v703, 2
        %v705 = vadd.f32 %v703, %v704
        %v706 = vrot.slane %v705, 1
        %v707 = vadd.f32 %v705, %v706
        %v708 = vsel %vm398, %v658, 0.0
        %v709 = vrot.slane %v708, 4
        %v710 = vadd.f32 %v708, %v709
        %v711 = vrot.slane %v710, 2
        %v712 = vadd.f32 %v710, %v711
        %v713 = vrot.slane %v712, 1
        %v714 = vadd.f32 %v712, %v713
        %v715 = vsel %vm398, %v659, 0.0
        %v716 = vrot.slane %v715, 4
        %v717 = vadd.f32 %v715, %v716
        %v718 = vrot.slane %v717, 2
        %v719 = vadd.f32 %v717, %v718
        %v720 = vrot.slane %v719, 1
        %v721 = vadd.f32 %v719, %v720
        %v722 = vsel %vm398, %v660, 0.0
        %v723 = vrot.slane %v722, 4
        %v724 = vadd.f32 %v722, %v723
        %v725 = vrot.slane %v724, 2
        %v726 = vadd.f32 %v724, %v725
        %v727 = vrot.slane %v726, 1
        %v728 = vadd.f32 %v726, %v727
        %v729 = vsel %vm398, %v661, 0.0
        %v730 = vrot.slane %v729, 4
        %v731 = vadd.f32 %v729, %v730
        %v732 = vrot.slane %v731, 2
        %v733 = vadd.f32 %v731, %v732
        %v734 = vrot.slane %v733, 1
        %v735 = vadd.f32 %v733, %v734
        %v736 = vsel %vm398, %v662, 0.0
        %v737 = vrot.slane %v736, 4
        %v738 = vadd.f32 %v736, %v737
        %v739 = vrot.slane %v738, 2
        %v740 = vadd.f32 %v738, %v739
        %v741 = vrot.slane %v740, 1
        %v742 = vadd.f32 %v740, %v741
        %v743 = vsel %vm398, %v663, 0.0
        %v744 = vrot.slane %v743, 4
        %v745 = vadd.f32 %v743, %v744
        %v746 = vrot.slane %v745, 2
        %v747 = vadd.f32 %v745, %v746
        %v748 = vrot.slane %v747, 1
        %v749 = vadd.f32 %v747, %v748
        %v750 = vsel %vm398, %v664, 0.0
        %v751 = vrot.slane %v750, 4
        %v752 = vadd.f32 %v750, %v751
        %v753 = vrot.slane %v752, 2
        %v754 = vadd.f32 %v752, %v753
        %v755 = vrot.slane %v754, 1
        %v756 = vadd.f32 %v754, %v755
        %v757 = vsel %vm398, %v665, 0.0
        %v758 = vrot.slane %v757, 4
        %v759 = vadd.f32 %v757, %v758
        %v760 = vrot.slane %v759, 2
        %v761 = vadd.f32 %v759, %v760
        %v762 = vrot.slane %v761, 1
        %v763 = vadd.f32 %v761, %v762
        %v764 = vsel %vm398, %v666, 0.0
        %v765 = vrot.slane %v764, 4
        %v766 = vadd.f32 %v764, %v765
        %v767 = vrot.slane %v766, 2
        %v768 = vadd.f32 %v766, %v767
        %v769 = vrot.slane %v768, 1
        %v770 = vadd.f32 %v768, %v769
        %v771 = vsel %vm398, %v667, 0.0
        %v772 = vrot.slane %v771, 4
        %v773 = vadd.f32 %v771, %v772
        %v774 = vrot.slane %v773, 2
        %v775 = vadd.f32 %v773, %v774
        %v776 = vrot.slane %v775, 1
        %v777 = vadd.f32 %v775, %v776
        %v778 = vsel %vm398, %v668, 0.0
        %v779 = vrot.slane %v778, 4
        %v780 = vadd.f32 %v778, %v779
        %v781 = vrot.slane %v780, 2
        %v782 = vadd.f32 %v780, %v781
        %v783 = vrot.slane %v782, 1
        %v784 = vadd.f32 %v782, %v783
        %v785 = vsel %vm398, %v669, 0.0
        %v786 = vrot.slane %v785, 4
        %v787 = vadd.f32 %v785, %v786
        %v788 = vrot.slane %v787, 2
        %v789 = vadd.f32 %v787, %v788
        %v790 = vrot.slane %v789, 1
        %v791 = vadd.f32 %v789, %v790
        %v792 = vsel %vm398, %v670, 0.0
        %v793 = vrot.slane %v792, 4
        %v794 = vadd.f32 %v792, %v793
        %v795 = vrot.slane %v794, 2
        %v796 = vadd.f32 %v794, %v795
        %v797 = vrot.slane %v796, 1
        %v798 = vadd.f32 %v796, %v797
        %vm799 = vcmask 1040384
        %v800 = vsel %vm799, %v244, %v405
        %v801 = vsel %vm799, %v251, %v412
        %v802 = vsel %vm799, %v258, %v419
        %v803 = vsel %vm799, %v265, %v426
        %v804 = vsel %vm799, %v272, %v433
        %v805 = vsel %vm799, %v279, %v440
        %v806 = vsel %vm799, %v286, %v447
        %v807 = vsel %vm799, %v293, %v454
        %v808 = vsel %vm799, %v300, %v461
        %v809 = vsel %vm799, %v307, %v468
        %v810 = vsel %vm799, %v314, %v475
        %v811 = vsel %vm799, %v321, %v482
        %v812 = vsel %vm799, %v328, %v489
        %v813 = vsel %vm799, %v335, %v496
        %v814 = vsel %vm799, %v342, %v503
        %v815 = vsel %vm799, %v349, %v510
        %vm816 = vcmask 1041408
        %v817 = vsel %vm816, %v800, %v549
        %v818 = vsel %vm816, %v801, %v556
        %v819 = vsel %vm816, %v802, %v563
        %v820 = vsel %vm816, %v803, %v570
        %v821 = vsel %vm816, %v804, %v577
        %v822 = vsel %vm816, %v805, %v584
        %v823 = vsel %vm816, %v806, %v591
        %v824 = vsel %vm816, %v807, %v598
        %v825 = vsel %vm816, %v808, %v605
        %v826 = vsel %vm816, %v809, %v612
        %v827 = vsel %vm816, %v810, %v619
        %v828 = vsel %vm816, %v811, %v626
        %v829 = vsel %vm816, %v812, %v633
        %v830 = vsel %vm816, %v813, %v640
        %v831 = vsel %vm816, %v814, %v647
        %v832 = vsel %vm816, %v815, %v654
        %vm833 = vcmask 1042432
        %v834 = vsel %vm833, %v817, %v693
        %v835 = vsel %vm833, %v818, %v700
        %v836 = vsel %vm833, %v819, %v707
        %v837 = vsel %vm833, %v820, %v714
        %v838 = vsel %vm833, %v821, %v721
        %v839 = vsel %vm833, %v822, %v728
        %v840 = vsel %vm833, %v823, %v735
        %v841 = vsel %vm833, %v824, %v742
        %v842 = vsel %vm833, %v825, %v749
        %v843 = vsel %vm833, %v826, %v756
        %v844 = vsel %vm833, %v827, %v763
        %v845 = vsel %vm833, %v828, %v770
        %v846 = vsel %vm833, %v829, %v777
        %v847 = vsel %vm833, %v830, %v784
        %v848 = vsel %vm833, %v831, %v791
        %v849 = vsel %vm833, %v832, %v798
        %vm850 = vcmask 11264
        %v851 = vsel %vm850, %v834, 0.0
        %852 = vadd.xlane.f32.xlu0 %v851
        %v853 = vpop.xlane.xlu0 %852
        %v854 = vsel %vm850, %v835, 0.0
        %855 = vadd.xlane.f32.xlu0 %v854
        %v856 = vpop.xlane.xlu0 %855
        %v857 = vsel %vm850, %v836, 0.0
        %858 = vadd.xlane.f32.xlu0 %v857
        %v859 = vpop.xlane.xlu0 %858
        %v860 = vsel %vm850, %v837, 0.0
        %861 = vadd.xlane.f32.xlu0 %v860
        %v862 = vpop.xlane.xlu0 %861
        %v863 = vsel %vm850, %v838, 0.0
        %864 = vadd.xlane.f32.xlu0 %v863
        %v865 = vpop.xlane.xlu0 %864
        %v866 = vsel %vm850, %v839, 0.0
        %867 = vadd.xlane.f32.xlu0 %v866
        %v868 = vpop.xlane.xlu0 %867
        %v869 = vsel %vm850, %v840, 0.0
        %870 = vadd.xlane.f32.xlu0 %v869
        %v871 = vpop.xlane.xlu0 %870
        %v872 = vsel %vm850, %v841, 0.0
        %873 = vadd.xlane.f32.xlu0 %v872
        %v874 = vpop.xlane.xlu0 %873
        %v875 = vsel %vm850, %v842, 0.0
        %876 = vadd.xlane.f32.xlu0 %v875
        %v877 = vpop.xlane.xlu0 %876
        %v878 = vsel %vm850, %v843, 0.0
        %879 = vadd.xlane.f32.xlu0 %v878
        %v880 = vpop.xlane.xlu0 %879
        %v881 = vsel %vm850, %v844, 0.0
        %882 = vadd.xlane.f32.xlu0 %v881
        %v883 = vpop.xlane.xlu0 %882
        %v884 = vsel %vm850, %v845, 0.0
        %885 = vadd.xlane.f32.xlu0 %v884
        %v886 = vpop.xlane.xlu0 %885
        %v887 = vsel %vm850, %v846, 0.0
        %888 = vadd.xlane.f32.xlu0 %v887
        %v889 = vpop.xlane.xlu0 %888
        %v890 = vsel %vm850, %v847, 0.0
        %891 = vadd.xlane.f32.xlu0 %v890
        %v892 = vpop.xlane.xlu0 %891
        %v893 = vsel %vm850, %v848, 0.0
        %894 = vadd.xlane.f32.xlu0 %v893
        %v895 = vpop.xlane.xlu0 %894
        %v896 = vsel %vm850, %v849, 0.0
        %897 = vadd.xlane.f32.xlu0 %v896
        %v898 = vpop.xlane.xlu0 %897
        %915 = vrot.lane.b32.xlu0 %v834, 127
        %v916 = vpop.permute.xlu0 %915
        %917 = vrot.lane.b32.xlu0 %v835, 127
        %v918 = vpop.permute.xlu0 %917
        %919 = vrot.lane.b32.xlu0 %v836, 127
        %v920 = vpop.permute.xlu0 %919
        %921 = vrot.lane.b32.xlu0 %v837, 127
        %v922 = vpop.permute.xlu0 %921
        %923 = vrot.lane.b32.xlu0 %v838, 127
        %v924 = vpop.permute.xlu0 %923
        %925 = vrot.lane.b32.xlu0 %v839, 127
        %v926 = vpop.permute.xlu0 %925
        %927 = vrot.lane.b32.xlu0 %v840, 127
        %v928 = vpop.permute.xlu0 %927
        %929 = vrot.lane.b32.xlu0 %v841, 127
        %v930 = vpop.permute.xlu0 %929
        %931 = vrot.lane.b32.xlu0 %v842, 127
        %v932 = vpop.permute.xlu0 %931
        %933 = vrot.lane.b32.xlu0 %v843, 127
        %v934 = vpop.permute.xlu0 %933
        %935 = vrot.lane.b32.xlu0 %v844, 127
        %v936 = vpop.permute.xlu0 %935
        %937 = vrot.lane.b32.xlu0 %v845, 127
        %v938 = vpop.permute.xlu0 %937
        %939 = vrot.lane.b32.xlu0 %v846, 127
        %v940 = vpop.permute.xlu0 %939
        %941 = vrot.lane.b32.xlu0 %v847, 127
        %v942 = vpop.permute.xlu0 %941
        %943 = vrot.lane.b32.xlu0 %v848, 127
        %v944 = vpop.permute.xlu0 %943
        %945 = vrot.lane.b32.xlu0 %v849, 127
        %v946 = vpop.permute.xlu0 %945
        %vm963 = vcmask 19456
        %v964 = vsel %vm963, %v916, 0.0
        %965 = vadd.xlane.f32.xlu0 %v964
        %v966 = vpop.xlane.xlu0 %965
        %v967 = vsel %vm963, %v918, 0.0
        %968 = vadd.xlane.f32.xlu0 %v967
        %v969 = vpop.xlane.xlu0 %968
        %v970 = vsel %vm963, %v920, 0.0
        %971 = vadd.xlane.f32.xlu0 %v970
        %v972 = vpop.xlane.xlu0 %971
        %v973 = vsel %vm963, %v922, 0.0
        %974 = vadd.xlane.f32.xlu0 %v973
        %v975 = vpop.xlane.xlu0 %974
        %v976 = vsel %vm963, %v924, 0.0
        %977 = vadd.xlane.f32.xlu0 %v976
        %v978 = vpop.xlane.xlu0 %977
        %v979 = vsel %vm963, %v926, 0.0
        %980 = vadd.xlane.f32.xlu0 %v979
        %v981 = vpop.xlane.xlu0 %980
        %v982 = vsel %vm963, %v928, 0.0
        %983 = vadd.xlane.f32.xlu0 %v982
        %v984 = vpop.xlane.xlu0 %983
        %v985 = vsel %vm963, %v930, 0.0
        %986 = vadd.xlane.f32.xlu0 %v985
        %v987 = vpop.xlane.xlu0 %986
        %v988 = vsel %vm963, %v932, 0.0
        %989 = vadd.xlane.f32.xlu0 %v988
        %v990 = vpop.xlane.xlu0 %989
        %v991 = vsel %vm963, %v934, 0.0
        %992 = vadd.xlane.f32.xlu0 %v991
        %v993 = vpop.xlane.xlu0 %992
        %v994 = vsel %vm963, %v936, 0.0
        %995 = vadd.xlane.f32.xlu0 %v994
        %v996 = vpop.xlane.xlu0 %995
        %v997 = vsel %vm963, %v938, 0.0
        %998 = vadd.xlane.f32.xlu0 %v997
        %v999 = vpop.xlane.xlu0 %998
        %v1000 = vsel %vm963, %v940, 0.0
        %1001 = vadd.xlane.f32.xlu0 %v1000
        %v1002 = vpop.xlane.xlu0 %1001
        %v1003 = vsel %vm963, %v942, 0.0
        %1004 = vadd.xlane.f32.xlu0 %v1003
        %v1005 = vpop.xlane.xlu0 %1004
        %v1006 = vsel %vm963, %v944, 0.0
        %1007 = vadd.xlane.f32.xlu0 %v1006
        %v1008 = vpop.xlane.xlu0 %1007
        %v1009 = vsel %vm963, %v946, 0.0
        %1010 = vadd.xlane.f32.xlu0 %v1009
        %v1011 = vpop.xlane.xlu0 %1010
        %1012 = vrot.lane.b32.xlu0 %v834, 125
        %v1013 = vpop.permute.xlu0 %1012
        %1014 = vrot.lane.b32.xlu0 %v835, 125
        %v1015 = vpop.permute.xlu0 %1014
        %1016 = vrot.lane.b32.xlu0 %v836, 125
        %v1017 = vpop.permute.xlu0 %1016
        %1018 = vrot.lane.b32.xlu0 %v837, 125
        %v1019 = vpop.permute.xlu0 %1018
        %1020 = vrot.lane.b32.xlu0 %v838, 125
        %v1021 = vpop.permute.xlu0 %1020
        %1022 = vrot.lane.b32.xlu0 %v839, 125
        %v1023 = vpop.permute.xlu0 %1022
        %1024 = vrot.lane.b32.xlu0 %v840, 125
        %v1025 = vpop.permute.xlu0 %1024
        %1026 = vrot.lane.b32.xlu0 %v841, 125
        %v1027 = vpop.permute.xlu0 %1026
        %1028 = vrot.lane.b32.xlu0 %v842, 125
        %v1029 = vpop.permute.xlu0 %1028
        %1030 = vrot.lane.b32.xlu0 %v843, 125
        %v1031 = vpop.permute.xlu0 %1030
        %1032 = vrot.lane.b32.xlu0 %v844, 125
        %v1033 = vpop.permute.xlu0 %1032
        %1034 = vrot.lane.b32.xlu0 %v845, 125
        %v1035 = vpop.permute.xlu0 %1034
        %1036 = vrot.lane.b32.xlu0 %v846, 125
        %v1037 = vpop.permute.xlu0 %1036
        %1038 = vrot.lane.b32.xlu0 %v847, 125
        %v1039 = vpop.permute.xlu0 %1038
        %1040 = vrot.lane.b32.xlu0 %v848, 125
        %v1041 = vpop.permute.xlu0 %1040
        %1042 = vrot.lane.b32.xlu0 %v849, 125
        %v1043 = vpop.permute.xlu0 %1042
        %v1060 = vsel %vm963, %v1013, 0.0
        %1061 = vadd.xlane.f32.xlu0 %v1060
        %v1062 = vpop.xlane.xlu0 %1061
        %v1063 = vsel %vm963, %v1015, 0.0
        %1064 = vadd.xlane.f32.xlu0 %v1063
        %v1065 = vpop.xlane.xlu0 %1064
        %v1066 = vsel %vm963, %v1017, 0.0
        %1067 = vadd.xlane.f32.xlu0 %v1066
        %v1068 = vpop.xlane.xlu0 %1067
        %v1069 = vsel %vm963, %v1019, 0.0
        %1070 = vadd.xlane.f32.xlu0 %v1069
        %v1071 = vpop.xlane.xlu0 %1070
        %v1072 = vsel %vm963, %v1021, 0.0
        %1073 = vadd.xlane.f32.xlu0 %v1072
        %v1074 = vpop.xlane.xlu0 %1073
        %v1075 = vsel %vm963, %v1023, 0.0
        %1076 = vadd.xlane.f32.xlu0 %v1075
        %v1077 = vpop.xlane.xlu0 %1076
        %v1078 = vsel %vm963, %v1025, 0.0
        %1079 = vadd.xlane.f32.xlu0 %v1078
        %v1080 = vpop.xlane.xlu0 %1079
        %v1081 = vsel %vm963, %v1027, 0.0
        %1082 = vadd.xlane.f32.xlu0 %v1081
        %v1083 = vpop.xlane.xlu0 %1082
        %v1084 = vsel %vm963, %v1029, 0.0
        %1085 = vadd.xlane.f32.xlu0 %v1084
        %v1086 = vpop.xlane.xlu0 %1085
        %v1087 = vsel %vm963, %v1031, 0.0
        %1088 = vadd.xlane.f32.xlu0 %v1087
        %v1089 = vpop.xlane.xlu0 %1088
        %v1090 = vsel %vm963, %v1033, 0.0
        %1091 = vadd.xlane.f32.xlu0 %v1090
        %v1092 = vpop.xlane.xlu0 %1091
        %v1093 = vsel %vm963, %v1035, 0.0
        %1094 = vadd.xlane.f32.xlu0 %v1093
        %v1095 = vpop.xlane.xlu0 %1094
        %v1096 = vsel %vm963, %v1037, 0.0
        %1097 = vadd.xlane.f32.xlu0 %v1096
        %v1098 = vpop.xlane.xlu0 %1097
        %v1099 = vsel %vm963, %v1039, 0.0
        %1100 = vadd.xlane.f32.xlu0 %v1099
        %v1101 = vpop.xlane.xlu0 %1100
        %v1102 = vsel %vm963, %v1041, 0.0
        %1103 = vadd.xlane.f32.xlu0 %v1102
        %v1104 = vpop.xlane.xlu0 %1103
        %v1105 = vsel %vm963, %v1043, 0.0
        %1106 = vadd.xlane.f32.xlu0 %v1105
        %v1107 = vpop.xlane.xlu0 %1106
        %1108 = vrot.lane.b32.xlu0 %v834, 123
        %v1109 = vpop.permute.xlu0 %1108
        %1110 = vrot.lane.b32.xlu0 %v835, 123
        %v1111 = vpop.permute.xlu0 %1110
        %1112 = vrot.lane.b32.xlu0 %v836, 123
        %v1113 = vpop.permute.xlu0 %1112
        %1114 = vrot.lane.b32.xlu0 %v837, 123
        %v1115 = vpop.permute.xlu0 %1114
        %1116 = vrot.lane.b32.xlu0 %v838, 123
        %v1117 = vpop.permute.xlu0 %1116
        %1118 = vrot.lane.b32.xlu0 %v839, 123
        %v1119 = vpop.permute.xlu0 %1118
        %1120 = vrot.lane.b32.xlu0 %v840, 123
        %v1121 = vpop.permute.xlu0 %1120
        %1122 = vrot.lane.b32.xlu0 %v841, 123
        %v1123 = vpop.permute.xlu0 %1122
        %1124 = vrot.lane.b32.xlu0 %v842, 123
        %v1125 = vpop.permute.xlu0 %1124
        %1126 = vrot.lane.b32.xlu0 %v843, 123
        %v1127 = vpop.permute.xlu0 %1126
        %1128 = vrot.lane.b32.xlu0 %v844, 123
        %v1129 = vpop.permute.xlu0 %1128
        %1130 = vrot.lane.b32.xlu0 %v845, 123
        %v1131 = vpop.permute.xlu0 %1130
        %1132 = vrot.lane.b32.xlu0 %v846, 123
        %v1133 = vpop.permute.xlu0 %1132
        %1134 = vrot.lane.b32.xlu0 %v847, 123
        %v1135 = vpop.permute.xlu0 %1134
        %1136 = vrot.lane.b32.xlu0 %v848, 123
        %v1137 = vpop.permute.xlu0 %1136
        %1138 = vrot.lane.b32.xlu0 %v849, 123
        %v1139 = vpop.permute.xlu0 %1138
        %v1156 = vsel %vm963, %v1109, 0.0
        %1157 = vadd.xlane.f32.xlu0 %v1156
        %v1158 = vpop.xlane.xlu0 %1157
        %v1159 = vsel %vm963, %v1111, 0.0
        %1160 = vadd.xlane.f32.xlu0 %v1159
        %v1161 = vpop.xlane.xlu0 %1160
        %v1162 = vsel %vm963, %v1113, 0.0
        %1163 = vadd.xlane.f32.xlu0 %v1162
        %v1164 = vpop.xlane.xlu0 %1163
        %v1165 = vsel %vm963, %v1115, 0.0
        %1166 = vadd.xlane.f32.xlu0 %v1165
        %v1167 = vpop.xlane.xlu0 %1166
        %v1168 = vsel %vm963, %v1117, 0.0
        %1169 = vadd.xlane.f32.xlu0 %v1168
        %v1170 = vpop.xlane.xlu0 %1169
        %v1171 = vsel %vm963, %v1119, 0.0
        %1172 = vadd.xlane.f32.xlu0 %v1171
        %v1173 = vpop.xlane.xlu0 %1172
        %v1174 = vsel %vm963, %v1121, 0.0
        %1175 = vadd.xlane.f32.xlu0 %v1174
        %v1176 = vpop.xlane.xlu0 %1175
        %v1177 = vsel %vm963, %v1123, 0.0
        %1178 = vadd.xlane.f32.xlu0 %v1177
        %v1179 = vpop.xlane.xlu0 %1178
        %v1180 = vsel %vm963, %v1125, 0.0
        %1181 = vadd.xlane.f32.xlu0 %v1180
        %v1182 = vpop.xlane.xlu0 %1181
        %v1183 = vsel %vm963, %v1127, 0.0
        %1184 = vadd.xlane.f32.xlu0 %v1183
        %v1185 = vpop.xlane.xlu0 %1184
        %v1186 = vsel %vm963, %v1129, 0.0
        %1187 = vadd.xlane.f32.xlu0 %v1186
        %v1188 = vpop.xlane.xlu0 %1187
        %v1189 = vsel %vm963, %v1131, 0.0
        %1190 = vadd.xlane.f32.xlu0 %v1189
        %v1191 = vpop.xlane.xlu0 %1190
        %v1192 = vsel %vm963, %v1133, 0.0
        %1193 = vadd.xlane.f32.xlu0 %v1192
        %v1194 = vpop.xlane.xlu0 %1193
        %v1195 = vsel %vm963, %v1135, 0.0
        %1196 = vadd.xlane.f32.xlu0 %v1195
        %v1197 = vpop.xlane.xlu0 %1196
        %v1198 = vsel %vm963, %v1137, 0.0
        %1199 = vadd.xlane.f32.xlu0 %v1198
        %v1200 = vpop.xlane.xlu0 %1199
        %v1201 = vsel %vm963, %v1139, 0.0
        %1202 = vadd.xlane.f32.xlu0 %v1201
        %v1203 = vpop.xlane.xlu0 %1202
        %vm1204 = vcmask 7168
        %v1205 = vsel %vm1204, %v853, %v966
        %v1206 = vsel %vm1204, %v856, %v969
        %v1207 = vsel %vm1204, %v859, %v972
        %v1208 = vsel %vm1204, %v862, %v975
        %v1209 = vsel %vm1204, %v865, %v978
        %v1210 = vsel %vm1204, %v868, %v981
        %v1211 = vsel %vm1204, %v871, %v984
        %v1212 = vsel %vm1204, %v874, %v987
        %v1213 = vsel %vm1204, %v877, %v990
        %v1214 = vsel %vm1204, %v880, %v993
        %v1215 = vsel %vm1204, %v883, %v996
        %v1216 = vsel %vm1204, %v886, %v999
        %v1217 = vsel %vm1204, %v889, %v1002
        %v1218 = vsel %vm1204, %v892, %v1005
        %v1219 = vsel %vm1204, %v895, %v1008
        %v1220 = vsel %vm1204, %v898, %v1011
        %vm1221 = vcmask 15360
        %v1222 = vsel %vm1221, %v1205, %v1062
        %v1223 = vsel %vm1221, %v1206, %v1065
        %v1224 = vsel %vm1221, %v1207, %v1068
        %v1225 = vsel %vm1221, %v1208, %v1071
        %v1226 = vsel %vm1221, %v1209, %v1074
        %v1227 = vsel %vm1221, %v1210, %v1077
        %v1228 = vsel %vm1221, %v1211, %v1080
        %v1229 = vsel %vm1221, %v1212, %v1083
        %v1230 = vsel %vm1221, %v1213, %v1086
        %v1231 = vsel %vm1221, %v1214, %v1089
        %v1232 = vsel %vm1221, %v1215, %v1092
        %v1233 = vsel %vm1221, %v1216, %v1095
        %v1234 = vsel %vm1221, %v1217, %v1098
        %v1235 = vsel %vm1221, %v1218, %v1101
        %v1236 = vsel %vm1221, %v1219, %v1104
        %v1237 = vsel %vm1221, %v1220, %v1107
        %vm1238 = vcmask 23552
        %v1239 = vsel %vm1238, %v1222, %v1158
        %v1240 = vsel %vm1238, %v1223, %v1161
        %v1241 = vsel %vm1238, %v1224, %v1164
        %v1242 = vsel %vm1238, %v1225, %v1167
        %v1243 = vsel %vm1238, %v1226, %v1170
        %v1244 = vsel %vm1238, %v1227, %v1173
        %v1245 = vsel %vm1238, %v1228, %v1176
        %v1246 = vsel %vm1238, %v1229, %v1179
        %v1247 = vsel %vm1238, %v1230, %v1182
        %v1248 = vsel %vm1238, %v1231, %v1185
        %v1249 = vsel %vm1238, %v1232, %v1188
        %v1250 = vsel %vm1238, %v1233, %v1191
        %v1251 = vsel %vm1238, %v1234, %v1194
        %v1252 = vsel %vm1238, %v1235, %v1197
        %v1253 = vsel %vm1238, %v1236, %v1200
        %v1254 = vsel %vm1238, %v1237, %v1203
        %v1255 = vmul.f32 %v1239, 0.037037037
        %v1256 = vmul.f32 %v1240, 0.037037037
        %v1257 = vmul.f32 %v1241, 0.037037037
        %v1258 = vmul.f32 %v1242, 0.037037037
        %v1259 = vmul.f32 %v1243, 0.037037037
        %v1260 = vmul.f32 %v1244, 0.037037037
        %v1261 = vmul.f32 %v1245, 0.037037037
        %v1262 = vmul.f32 %v1246, 0.037037037
        %v1263 = vmul.f32 %v1247, 0.037037037
        %v1264 = vmul.f32 %v1248, 0.037037037
        %v1265 = vmul.f32 %v1249, 0.037037037
        %v1266 = vmul.f32 %v1250, 0.037037037
        %v1267 = vmul.f32 %v1251, 0.037037037
        %v1268 = vmul.f32 %v1252, 0.037037037
        %v1269 = vmul.f32 %v1253, 0.037037037
        %v1270 = vmul.f32 %v1254, 0.037037037
        %vm1271 = vcmask 27648
        %1272 = vst.msk [vmem:[%s142] sm:$0xf] %vm1271, %v1255
        %1273 = vst.msk [vmem:[%s142 + $0x4] sm:$0xf] %vm1271, %v1256
        %1274 = vst.msk [vmem:[%s142 + $0x8] sm:$0xf] %vm1271, %v1257
        %1275 = vst.msk [vmem:[%s142 + $0xc] sm:$0xf] %vm1271, %v1258
        %1276 = vst.msk [vmem:[%s142 + $0x10] sm:$0xf] %vm1271, %v1259
        %1277 = vst.msk [vmem:[%s142 + $0x14] sm:$0xf] %vm1271, %v1260
        %1278 = vst.msk [vmem:[%s142 + $0x18] sm:$0xf] %vm1271, %v1261
        %1279 = vst.msk [vmem:[%s142 + $0x1c] sm:$0xf] %vm1271, %v1262
        %1280 = vst.msk [vmem:[%s142 + $0x20] sm:$0xf] %vm1271, %v1263
        %1281 = vst.msk [vmem:[%s142 + $0x24] sm:$0xf] %vm1271, %v1264
        %1282 = vst.msk [vmem:[%s142 + $0x28] sm:$0xf] %vm1271, %v1265
        %1283 = vst.msk [vmem:[%s142 + $0x2c] sm:$0xf] %vm1271, %v1266
        %1284 = vst.msk [vmem:[%s142 + $0x30] sm:$0xf] %vm1271, %v1267
        %1285 = vst.msk [vmem:[%s142 + $0x34] sm:$0xf] %vm1271, %v1268
        %1286 = vst.msk [vmem:[%s142 + $0x38] sm:$0xf] %vm1271, %v1269
        %1287 = vst.msk [vmem:[%s142 + $0x3c] sm:$0xf] %vm1271, %v1270
        %s1288 = smul.u32 4, %s15
        %p1289 = scmp.lt.s32.totalorder %s1288, 7
        %s1290 = scalar_select %p1289, %s1288, 7
        %s1291 = smul.addr %s1290, 4
        %s1292 = smul.addr %s1291, 4
        %s1293 = scalar_lea.vmem %s1, %s1292
        // Predicated region
        $region29: #{tpu_custom_call.1} parent=23 // pred_check
          %p1294 = pneg %p59
        $region30: #{tpu_custom_call.1} parent=23 // pred_check_branch
          %1296 = sbr.rel (%p1294) target = $region32
        $region31: #{tpu_custom_call.1} parent=23 // pred_region
          %s1297 = smul.u32 4, %s15
        $region32: #{tpu_custom_call.1} parent=23 // pred_fallthru
          _
      $region24: #{tpu_custom_call.1} parent=5 // pred_fallthru
        _
      %p1298 = scmp.le.s32.totalorder 2, %s10
      // Predicated region
      $region33: #{tpu_custom_call.1} parent=5 // pred_check
        %p1299 = pneg %p1298
      $region34: #{tpu_custom_call.1} parent=5 // pred_check_branch
        %1301 = sbr.rel (%p1299) target = $region36
      $region35: #{tpu_custom_call.1} parent=5 // pred_region
        %s1302 = ssub.s32 %s10, 2
        // Predicated region
        $region37: #{tpu_custom_call.1} parent=35 // pred_check
          %p1303 = pneg %p65
        $region38: #{tpu_custom_call.1} parent=35 // pred_check_branch
          %1305 = sbr.rel (%p1303) target = $region40
        $region39: #{tpu_custom_call.1} parent=35 // pred_region
          %s1306 = smul.u32 4, %s16
          %p1307 = scmp.lt.s32.totalorder %s1306, 7
          %s1308 = scalar_select %p1307, %s1306, 7
          %s1309 = smul.addr %s1308, 4
          %s1310 = smul.addr %s1309, 4
          %s1311 = scalar_lea.vmem %s1, %s1310
        $region40: #{tpu_custom_call.1} parent=35 // pred_fallthru
          _
      $region36: #{tpu_custom_call.1} parent=5 // pred_fallthru
        _
    $region6: #{tpu_custom_call.1} parent=1 // loop_footer
      %s14 = sadd.s32 1, %s10
    $region7: #{tpu_custom_call.1} parent=1 // loop_footer_branch
      %9 = sbr.rel target = $region3
    $region8: #{tpu_custom_call.1} parent=1 // loop_exit
      _
    %1312 = vsyncpa [#allocation3], 1
    %s1313 = scalar_lea.sflag [#allocation3], 1
    %1314 = vsyncpa %s1313, 1

</llo_original>
